<compile_context>
chip_gen: v7x
topology: tpu7x:2x2x1
jax: 0.10.0
libtpu: 0.0.40
codegen_flags: <defaults>
</compile_context>

<pallas_src>
import jax
import jax.numpy as jnp
import numpy as np
from jax.experimental import pallas as pl
from jax.experimental.pallas import tpu as pltpu


def _bernoulli_kernel(x_ref, w_ref, b_ref, logits_ref, probs_ref):
    # x_ref:      (TB, K)        batch tile, features on the lane axis
    # w_ref:      (K, N_pad)     pre-transposed, lane-padded weight
    # b_ref:      (1, N_pad)     lane-padded bias
    # logits_ref: (TB, N_pad)    lane-dense output
    # probs_ref:  (TB, N_pad)    lane-dense output
    logits = jnp.dot(x_ref[...], w_ref[...],
                     preferred_element_type=jnp.float32) + b_ref[...]
    logits_ref[...] = logits.astype(logits_ref.dtype)
    # Bernoulli(logits=...) <=> probs = sigmoid(logits)
    probs_ref[...] = jax.nn.sigmoid(logits).astype(probs_ref.dtype)


def _round_up(v, m):
    return ((v + m - 1) // m) * m


def bernoulli_forward(x, weight, bias, *, batch_tile=512):
    """Forward pass of the `Bernoulli` module.

    Args:
      x:      (B, num_inputs) float32
      weight: (num_outputs, num_inputs) float32   (PyTorch Linear layout)
      bias:   (num_outputs,) float32
    Returns:
      (logits, probs), each (B, num_outputs) float32.
    """
    B, K = x.shape
    N = weight.shape[0]

    # --- one-time (per call) parameter plumbing, done in plain XLA ---------
    # Pre-transpose the weight (no in-kernel .T / XLU relayout) and pad the
    # output feature dim to a multiple of 128 so stores are lane-dense.
    # NOTE: in a real model, transpose/pad the params once at init time.
    N_pad = _round_up(N, 128)
    wt = jnp.zeros((K, N_pad), jnp.float32).at[:, :N].set(
        weight.T.astype(jnp.float32))
    b2 = jnp.zeros((1, N_pad), jnp.float32).at[0, :N].set(
        bias.astype(jnp.float32))

    # Batch padding: sublane-align (8); if tiled, round up to the tile size.
    B_sub = _round_up(B, 8)
    if B_sub <= batch_tile:
        TB = B_sub
        B_pad = B_sub
    else:
        TB = batch_tile            # multiple of 8
        B_pad = _round_up(B, TB)

    if B_pad != B:
        x_p = jnp.zeros((B_pad, K), x.dtype).at[:B].set(x)
    else:
        x_p = x

    out_shapes = (
        jax.ShapeDtypeStruct((B_pad, N_pad), jnp.float32),
        jax.ShapeDtypeStruct((B_pad, N_pad), jnp.float32),
    )

    if B_pad == TB:
        # Single block: no grid, no per-step pipeline overhead. Everything is
        # resident in VMEM for the duration of the (tiny) kernel.
        logits_p, probs_p = pl.pallas_call(
            _bernoulli_kernel,
            out_shape=out_shapes,
            in_specs=[
                pl.BlockSpec(memory_space=pltpu.MemorySpace.VMEM),
                pl.BlockSpec(memory_space=pltpu.MemorySpace.VMEM),
                pl.BlockSpec(memory_space=pltpu.MemorySpace.VMEM),
            ],
            out_specs=(
                pl.BlockSpec(memory_space=pltpu.MemorySpace.VMEM),
                pl.BlockSpec(memory_space=pltpu.MemorySpace.VMEM),
            ),
        )(x_p, wt, b2)
    else:
        # Large batch: tile over the batch axis (parallel -> sharded across
        # TensorCores on megacore parts); weight/bias stay resident.
        grid = (B_pad // TB,)
        logits_p, probs_p = pl.pallas_call(
            _bernoulli_kernel,
            out_shape=out_shapes,
            grid=grid,
            in_specs=[
                pl.BlockSpec((TB, K), lambda i: (i, 0)),
                pl.BlockSpec((K, N_pad), lambda i: (0, 0)),
                pl.BlockSpec((1, N_pad), lambda i: (0, 0)),
            ],
            out_specs=(
                pl.BlockSpec((TB, N_pad), lambda i: (i, 0)),
                pl.BlockSpec((TB, N_pad), lambda i: (i, 0)),
            ),
            compiler_params=pltpu.CompilerParams(
                dimension_semantics=("parallel",)),
        )(x_p, wt, b2)

    # Slice back to the logical shape.
    return logits_p[:B, :N], probs_p[:B, :N]


def orthogonal_init(key, rows, cols, gain=1.0):
    """Deterministic equivalent of nn.init.orthogonal_ for a (rows, cols) matrix."""
    flat_rows, flat_cols = (rows, cols) if rows >= cols else (cols, rows)
    a = jax.random.normal(key, (flat_rows, flat_cols), dtype=jnp.float32)
    q, r = jnp.linalg.qr(a)
    d = jnp.sign(jnp.diag(r))          # sign correction, as in PyTorch
    q = q * d[None, :]
    if rows < cols:
        q = q.T
    return gain * q[:rows, :cols]


if __name__ == "__main__":
    num_inputs = 32
    num_outputs = 8

    key = jax.random.PRNGKey(0)
    k_x, k_w, k_x2 = jax.random.split(key, 3)

    # Parameters: orthogonal weight (num_outputs, num_inputs), zero bias.
    weight = orthogonal_init(k_w, num_outputs, num_inputs)
    bias = jnp.zeros((num_outputs,), dtype=jnp.float32)

    # --- small batch: exercises the no-grid single-block path --------------
    batch = 8
    x = jax.random.normal(k_x, (batch, num_inputs), dtype=jnp.float32)
    logits, probs = bernoulli_forward(x, weight, bias)
    jax.block_until_ready((logits, probs))

    logits_ref = x @ weight.T + bias[None, :]
    probs_ref = jax.nn.sigmoid(logits_ref)
    np.testing.assert_allclose(np.asarray(logits), np.asarray(logits_ref),
                               rtol=1e-5, atol=1e-5)
    np.testing.assert_allclose(np.asarray(probs), np.asarray(probs_ref),
                               rtol=1e-5, atol=1e-5)

    # --- larger batch: exercises the batch-tiled ("parallel") grid path ----
    big_batch = 1000
    x2 = jax.random.normal(k_x2, (big_batch, num_inputs), dtype=jnp.float32)
    logits2, probs2 = bernoulli_forward(x2, weight, bias)
    jax.block_until_ready((logits2, probs2))

    logits2_ref = x2 @ weight.T + bias[None, :]
    probs2_ref = jax.nn.sigmoid(logits2_ref)
    np.testing.assert_allclose(np.asarray(logits2), np.asarray(logits2_ref),
                               rtol=1e-5, atol=1e-5)
    np.testing.assert_allclose(np.asarray(probs2), np.asarray(probs2_ref),
                               rtol=1e-5, atol=1e-5)

    print("KERNEL_OK")
</pallas_src>

<mosaic_0001>
module attributes {stable_mosaic.version = 11 : i64} {
  func.func @_bernoulli_kernel(%arg0: memref<8x32xf32, #tpu.memory_space<vmem>>, %arg1: memref<32x128xf32, #tpu.memory_space<vmem>>, %arg2: memref<1x128xf32, #tpu.memory_space<vmem>>, %arg3: memref<8x128xf32, #tpu.memory_space<vmem>>, %arg4: memref<8x128xf32, #tpu.memory_space<vmem>>) attributes {dimension_semantics = [], scalar_prefetch = 0 : i64, scratch_operands = 0 : i64, tpu.core_type = #tpu.core_type<tc>} {
    %c0 = arith.constant 0 : index
    %c0_0 = arith.constant 0 : index
    %0 = vector.load %arg0[%c0, %c0_0] : memref<8x32xf32, #tpu.memory_space<vmem>>, vector<8x32xf32>
    %c0_1 = arith.constant 0 : index
    %c0_2 = arith.constant 0 : index
    %1 = vector.load %arg1[%c0_1, %c0_2] : memref<32x128xf32, #tpu.memory_space<vmem>>, vector<32x128xf32>
    %cst = arith.constant dense<0.000000e+00> : vector<8x128xf32>
    %2 = tpu.matmul %0, %1, %cst {dimension_numbers = #tpu.dot_dimension_numbers<[1], [0], [0], [1], [0, 0, 1, 1], [], []>} : vector<8x32xf32>, vector<32x128xf32>, vector<8x128xf32> -> vector<8x128xf32>
    %c0_3 = arith.constant 0 : index
    %c0_4 = arith.constant 0 : index
    %3 = vector.load %arg2[%c0_3, %c0_4] : memref<1x128xf32, #tpu.memory_space<vmem>>, vector<1x128xf32>
    %4 = vector.broadcast %3 : vector<1x128xf32> to vector<8x128xf32>
    %5 = arith.addf %2, %4 : vector<8x128xf32>
    %c0_5 = arith.constant 0 : index
    %c0_6 = arith.constant 0 : index
    %6 = vector.load %arg3[%c0_5, %c0_6] : memref<8x128xf32, #tpu.memory_space<vmem>>, vector<8x128xf32>
    tpu.vector_store %arg3[%c0_5, %c0_6], %5 {strides = array<i32>} : memref<8x128xf32, #tpu.memory_space<vmem>>, vector<8x128xf32>,
    %7 = arith.negf %5 : vector<8x128xf32>
    %8 = math.exp %7 : vector<8x128xf32>
    %cst_7 = arith.constant 1.000000e+00 : f32
    %9 = vector.broadcast %cst_7 : f32 to vector<8x128xf32>
    %10 = arith.addf %9, %8 : vector<8x128xf32>
    %11 = arith.divf %9, %10 : vector<8x128xf32>
    %c0_8 = arith.constant 0 : index
    %c0_9 = arith.constant 0 : index
    %12 = vector.load %arg4[%c0_8, %c0_9] : memref<8x128xf32, #tpu.memory_space<vmem>>, vector<8x128xf32>
    tpu.vector_store %arg4[%c0_8, %c0_9], %11 {strides = array<i32>} : memref<8x128xf32, #tpu.memory_space<vmem>>, vector<8x128xf32>,
    return
  }
}

</mosaic_0001>

<llo_original>
// kernel: tpu_custom_call.1
$region0: #{tpu_custom_call.1}
  #allocation0 [shape = 'u32[]', space=smem, size = 0x4, offset = 0x4, fixed_abs, tag = 'smem constant byte address 0x4 - core index']
  #allocation1 [shape = 'u32[144,128]{1,0:T(1,128)}', space=vmem, size = 0x12000, scoped, tag = 'internal scratch']
  %s0 = inlined_call_operand.hbm [shape: f32[8,32], index: 0, kind: input, shape index: {}]
  %s1 = inlined_call_operand.hbm [shape: f32[32,128], index: 1, kind: input, shape index: {}]
  %s2 = inlined_call_operand.vmem [shape: f32[1,128], index: 2, kind: input, shape index: {}]
  %s3 = inlined_call_operand.hbm [shape: f32[8,128], index: 3, kind: output, shape index: {0}]
  %s4 = inlined_call_operand.hbm [shape: f32[8,128], index: 4, kind: output, shape index: {1}]
  %5 = xla_tuple %s3, %s4
  %s6 = sld [smem:[#allocation0]]
  $region38: #{tpu_custom_call.1} parent=0
    _
  %s8 = ssub.s32 1, %s6
  %s9 = scalar_select 0, %s8, %s6
  $region1: #{tpu_custom_call.1} parent=0
    #allocation2 [shape = 'u8[4096]{0}', space=vmem, size = 0x1000, scoped, tag = 'input window, operand 0, single buffered']
    #allocation3 [shape = 's32[1]{0}', space=sflag, size = 0x4, scoped, tag = 'scoped memory for tpu_custom_call.1']
    #allocation4 [shape = 's32[1]{0}', space=sflag, size = 0x4, scoped, tag = 'scoped memory for tpu_custom_call.1']
    #allocation5 [shape = 'u8[16384]{0}', space=vmem, size = 0x4000, scoped, tag = 'input window, operand 1, single buffered']
    #allocation6 [shape = 's32[1]{0}', space=sflag, size = 0x4, scoped, tag = 'scoped memory for tpu_custom_call.1']
    #allocation7 [shape = 'u8[4096]{0}', space=vmem, size = 0x1000, scoped, tag = 'output window, operand 0, single buffered']
    #allocation8 [shape = 'u8[4096]{0}', space=vmem, size = 0x1000, scoped, tag = 'output window, operand 1, single buffered']
    #allocation9 [shape = 's32[1]{0}', space=sflag, size = 0x4, scoped, tag = 'scoped memory for tpu_custom_call.1']
    %10 = vsyncpa [#allocation3], 0
    %11 = vsyncpa [#allocation6], 0
    %12 = vsyncpa [#allocation4], 0
    %13 = vsyncpa [#allocation9], 0
    // Predicated region
    $region2: #{tpu_custom_call.1} parent=1 // pred_check
      _
    $region3: #{tpu_custom_call.1} parent=1 // pred_check_branch
      %15 = sbr.rel (0) target = $region5
    $region4: #{tpu_custom_call.1} parent=1 // pred_region
      %s17 = ssub.s32 128, 128
      %18 = vsyncadd [#allocation3], %s17
      %s20 = sshll.u32 [#allocation2], 4
      %s21 = int_to_ptr.vmem [resolvable:$true] %s20
      %23 = dma.hbm_to_vmem [thread:$0]  %s0, 128, %s21, [#allocation3]
    $region5: #{tpu_custom_call.1} parent=1 // pred_fallthru
      _
    // Predicated region
    $region6: #{tpu_custom_call.1} parent=1 // pred_check
      _
    $region7: #{tpu_custom_call.1} parent=1 // pred_check_branch
      %25 = sbr.rel (0) target = $region9
    $region8: #{tpu_custom_call.1} parent=1 // pred_region
      %s27 = ssub.s32 512, 512
      %28 = vsyncadd [#allocation6], %s27
      %s29 = sshll.u32 [#allocation5], 4
      %s30 = int_to_ptr.vmem [resolvable:$true] %s29
      %35 = dma.hbm_to_vmem [thread:$0]  %s1, 512, %s30, [#allocation6], 128, 128, 8
    $region9: #{tpu_custom_call.1} parent=1 // pred_fallthru
      _
    // Predicated region
    $region10: #{tpu_custom_call.1} parent=1 // pred_check
      _
    $region11: #{tpu_custom_call.1} parent=1 // pred_check_branch
      %37 = sbr.rel (0) target = $region13
    $region12: #{tpu_custom_call.1} parent=1 // pred_region
      _
    $region13: #{tpu_custom_call.1} parent=1 // pred_fallthru
      _
    // Predicated region
    $region14: #{tpu_custom_call.1} parent=1 // pred_check
      _
    $region15: #{tpu_custom_call.1} parent=1 // pred_check_branch
      %39 = sbr.rel (0) target = $region17
    $region16: #{tpu_custom_call.1} parent=1 // pred_region
      %40 = dma.done [#allocation3], 128
    $region17: #{tpu_custom_call.1} parent=1 // pred_fallthru
      _
    // Predicated region
    $region18: #{tpu_custom_call.1} parent=1 // pred_check
      _
    $region19: #{tpu_custom_call.1} parent=1 // pred_check_branch
      %42 = sbr.rel (0) target = $region21
    $region20: #{tpu_custom_call.1} parent=1 // pred_region
      %43 = dma.done [#allocation6], 512
    $region21: #{tpu_custom_call.1} parent=1 // pred_fallthru
      _
    %v44 = vld [vmem:[#allocation2] sm:$0xff]
    %v45 = vld [vmem:[#allocation5] sm:$0xff]
    %v46 = vld [vmem:[#allocation5 + $0x8] sm:$0xff]
    %v47 = vld [vmem:[#allocation5 + $0x10] sm:$0xff]
    %v48 = vld [vmem:[#allocation5 + $0x18] sm:$0xff]
    %v49 = vld [vmem:[%s2] sm:$0x1]
    %v51 = vlaneseq
    %v52 = vshrl.u32 %v51, 7
    %v53 = vsub.s32 0, %v52
    %v54 = vrot.slane %v49, %v53
    %vm56 = vcmask 261120
    %v58 = vsel %vm56, %v44, 0
    %60 = vmatprep.subr.mxu0 0.0
    %61 = vmatpush1.msra.mxu0 %v45
    %62 = vmatprep.subr.mxu0 0.0
    %63 = vmatpush1.msra.mxu0 %v46
    %64 = vmatprep.subr.mxu0 0.0
    %65 = vmatpush1.msra.mxu0 %v47
    %66 = vmatprep.subr.mxu0 0.0
    %67 = vmatpush1.msra.mxu0 %v48
    %68 = vmatprep.subr.mxu0 0.0
    %69 = vmatpush1.msra.mxu0 0.0
    %70 = vmatprep.subr.mxu0 0.0
    %71 = vmatpush1.msra.mxu0 0.0
    %72 = vmatprep.subr.mxu0 0.0
    %73 = vmatpush1.msra.mxu0 0.0
    %74 = vmatprep.subr.mxu0 0.0
    %75 = vmatpush1.msra.mxu0 0.0
    %76 = vmatprep.subr.mxu0 0.0
    %77 = vmatpush1.msra.mxu0 0.0
    %78 = vmatprep.subr.mxu0 0.0
    %79 = vmatpush1.msra.mxu0 0.0
    %80 = vmatprep.subr.mxu0 0.0
    %81 = vmatpush1.msra.mxu0 0.0
    %82 = vmatprep.subr.mxu0 0.0
    %83 = vmatpush1.msra.mxu0 0.0
    %84 = vmatprep.subr.mxu0 0.0
    %85 = vmatpush1.msra.mxu0 0.0
    %86 = vmatprep.subr.mxu0 0.0
    %87 = vmatpush1.msra.mxu0 0.0
    %88 = vmatprep.subr.mxu0 0.0
    %89 = vmatpush1.msra.mxu0 0.0
    %90 = vmatprep.subr.mxu0 0.0
    %91 = vmatpush1.msra.mxu0 0.0
    %92 = vmatprep.subr.mxu0 0.0
    %93 = vmatpush1.msra.mxu0 0.0
    %94 = vmatprep.subr.mxu0 0.0
    %95 = vmatpush1.msra.mxu0 0.0
    %96 = vmatprep.subr.mxu0 0.0
    %97 = vmatpush1.msra.mxu0 0.0
    %98 = vmatprep.subr.mxu0 0.0
    %99 = vmatpush1.msra.mxu0 0.0
    %100 = vmatprep.subr.mxu0 0.0
    %101 = vmatpush1.msra.mxu0 0.0
    %102 = vmatprep.subr.mxu0 0.0
    %103 = vmatpush1.msra.mxu0 0.0
    %104 = vmatprep.subr.mxu0 0.0
    %105 = vmatpush1.msra.mxu0 0.0
    %106 = vmatprep.subr.mxu0 0.0
    %107 = vmatpush1.msra.mxu0 0.0
    %108 = vmatprep.subr.mxu0 0.0
    %109 = vmatpush1.msra.mxu0 0.0
    %110 = vmatprep.subr.mxu0 0.0
    %111 = vmatpush1.msra.mxu0 0.0
    %112 = vmatprep.subr.mxu0 0.0
    %113 = vmatpush1.msra.mxu0 0.0
    %114 = vmatprep.subr.mxu0 0.0
    %115 = vmatpush1.msra.mxu0 0.0
    %116 = vmatprep.subr.mxu0 0.0
    %117 = vmatpush1.msra.mxu0 0.0
    %118 = vmatprep.subr.mxu0 0.0
    %119 = vmatpush1.msra.mxu0 0.0
    %120 = vmatprep.subr.mxu0 0.0
    %121 = vmatpush1.msra.mxu0 0.0
    %122 = vmatprep.subr.mxu0 0.0
    %123 = vmatpush1.msra.mxu0 0.0
    %124 = vmatprep.mubr.f32.mxu0 0.0
    %125 = vmatmul.mubr.f32.gmra.mrb[0].mxu0 %v58
    %v126 = vpop.f32.mrb[0].mxu0
    %v127 = vadd.f32 %v54, %v126
    %v128 = vpop.f32.mrb[0].mxu0
    %129 = vdwg.mxu0
    %130 = vst [vmem:[#allocation7] sm:$0xff] %v127
    %v131 = vxor.u32 %v127, 2147483648
    %v132 = vmul.f32 %v131, 1.442695
    %v133 = vpow.pop %v132
    %v134 = vadd.f32 %v133, 1.0
    %v135 = vrcp.pop %v134
    %v136 = vmul.f32 1.0, %v135
    %137 = vst [vmem:[#allocation8] sm:$0xff] %v136
    // Predicated region
    $region22: #{tpu_custom_call.1} parent=1 // pred_check
      _
    $region23: #{tpu_custom_call.1} parent=1 // pred_check_branch
      %139 = sbr.rel (0) target = $region25
    $region24: #{tpu_custom_call.1} parent=1 // pred_region
      %s141 = ssub.s32 128, 128
      %142 = vsyncadd [#allocation4], %s141
      %s144 = sshll.u32 [#allocation7], 4
      %s145 = int_to_ptr.vmem [resolvable:$true] %s144
      %147 = dma.vmem_to_hbm [thread:$0]  %s145, 128, %s3, [#allocation4]
    $region25: #{tpu_custom_call.1} parent=1 // pred_fallthru
      _
    // Predicated region
    $region26: #{tpu_custom_call.1} parent=1 // pred_check
      _
    $region27: #{tpu_custom_call.1} parent=1 // pred_check_branch
      %149 = sbr.rel (0) target = $region29
    $region28: #{tpu_custom_call.1} parent=1 // pred_region
      %s151 = ssub.s32 128, 128
      %152 = vsyncadd [#allocation9], %s151
      %s154 = sshll.u32 [#allocation8], 4
      %s155 = int_to_ptr.vmem [resolvable:$true] %s154
      %157 = dma.vmem_to_hbm [thread:$0]  %s155, 128, %s4, [#allocation9]
    $region29: #{tpu_custom_call.1} parent=1 // pred_fallthru
      _
    // Predicated region
    $region30: #{tpu_custom_call.1} parent=1 // pred_check
      _
    $region31: #{tpu_custom_call.1} parent=1 // pred_check_branch
      %159 = sbr.rel (0) target = $region33
    $region32: #{tpu_custom_call.1} parent=1 // pred_region
      %160 = dma.done [#allocation4], 128
    $region33: #{tpu_custom_call.1} parent=1 // pred_fallthru
      _
    // Predicated region
    $region34: #{tpu_custom_call.1} parent=1 // pred_check
      _
    $region35: #{tpu_custom_call.1} parent=1 // pred_check_branch
      %162 = sbr.rel (0) target = $region37
    $region36: #{tpu_custom_call.1} parent=1 // pred_region
      %163 = dma.done [#allocation9], 128
    $region37: #{tpu_custom_call.1} parent=1 // pred_fallthru
      _
    %164 = vsyncpa [#allocation3], 1
    %165 = vsyncpa [#allocation6], 1
    %166 = vsyncpa [#allocation4], 1
    %167 = vsyncpa [#allocation9], 1

</llo_original>
